<compile_context>
chip_gen: v6e
topology: v6e:2x2x1
jax: 0.10.0
libtpu: 0.0.40
codegen_flags: <defaults>
</compile_context>

<pallas_src>
import functools

import jax
import jax.numpy as jnp
from jax import lax
from jax.experimental import pallas as pl
from jax.experimental.pallas import tpu as pltpu

# ----------------------------- config (opt / LoraConfig) ----------------------
LORA_R = 16
LORA_ALPHA = 32
LORA_SCALING = LORA_ALPHA / LORA_R      # peft scaling = alpha / r = 2.0
TEMPERATURE = 0.05
LABEL_SMOOTHING = 0.1
NORM_QUERY = False                      # opt.norm_query (contriever default)
NORM_DOC = False                        # opt.norm_doc


# ------------- kernel 1: vectorized embed-gather + masked mean pool + projection -------------
def _encoder_kernel(norm_query, norm_doc, tok_ref, msk_ref, table_ref, w_ref, out_ref):
    """Grid = (encoder e in {0:query, 1:doc}, batch tile i); both axes parallel.

    tok_ref   : VMEM (TB, S) int32 token ids for this (encoder, tile)
    msk_ref   : VMEM (TB, S) f32 attention mask (0/1)
    table_ref : VMEM (V, D)  bf16 embedding table (constant across the grid)
    w_ref     : VMEM (D, Dout) bf16, pre-transposed; doc weight has LoRA folded in
    out_ref   : VMEM (TB, Dout) f32 output block
    """
    e = pl.program_id(0)
    TB, S = tok_ref.shape
    V, D = table_ref.shape

    tok = tok_ref[...]                                       # (TB, S) int32
    msk = msk_ref[...]                                       # (TB, S) f32
    den = jnp.maximum(jnp.sum(msk, axis=-1, keepdims=True), 1.0)   # (TB, 1), guard all-pad rows

    # Vectorized gather: masked one-hot token counts for the WHOLE tile, then a single
    # counts @ table matmul on the MXU.  Each step below is full-width (TB, V) VPU work
    # (lane-broadcast compare + FMA), not a scalar gather.
    vocab_ids = lax.broadcasted_iota(jnp.int32, (TB, V), 1)        # (TB, V)
    weights = jnp.zeros((TB, V), jnp.float32)
    for s in range(S):                                             # S small; static lane slices
        weights = weights + msk[:, s:s + 1] * (tok[:, s:s + 1] == vocab_ids).astype(jnp.float32)
    # TODO(synk): at production S (512) switch to lax.fori_loop(unroll=4..8) over an (S, TB)
    #             token layout; at production vocab the table stays in HBM with DMA row gather
    #             instead of this O(V)-per-token one-hot.

    # counts are small exact integers -> bf16 cast is exact; table is stored bf16.
    pooled = jnp.dot(weights.astype(jnp.bfloat16), table_ref[...],
                     preferred_element_type=jnp.float32)           # (TB, D) f32
    pooled = pooled * pl.reciprocal(den, approx=True)              # EUP reciprocal (free slot)

    # Projection on the MXU: bf16 inputs, f32 accumulate; weights already (D, Dout) so no
    # in-kernel transpose; LoRA is pre-folded into the doc weight.
    y = jnp.dot(pooled.astype(jnp.bfloat16), w_ref[...],
                preferred_element_type=jnp.float32)                # (TB, Dout) f32

    if norm_query or norm_doc:                                     # optional L2 normalization
        nq = jnp.float32(1.0 if norm_query else 0.0)
        nd = jnp.float32(1.0 if norm_doc else 0.0)
        donorm = jnp.where(e == 0, nq, nd)
        inv = lax.rsqrt(jnp.sum(y * y, axis=-1, keepdims=True) + 1e-12)
        y = y * (donorm * inv + (1.0 - donorm))

    out_ref[...] = y


def encode_pair(table, w_stacked, tokens2, masks2, *, batch, seq, tile_b,
                norm_query=NORM_QUERY, norm_doc=NORM_DOC):
    """Runs both encoders (query + doc) in one pallas_call. Returns (2, B, Dout) f32."""
    V, D = table.shape
    d_out = w_stacked.shape[-1]
    kernel = functools.partial(_encoder_kernel, norm_query, norm_doc)
    return pl.pallas_call(
        kernel,
        out_shape=jax.ShapeDtypeStruct((2, batch, d_out), jnp.float32),
        grid_spec=pltpu.PrefetchScalarGridSpec(
            num_scalar_prefetch=0,
            grid=(2, batch // tile_b),
            in_specs=[
                pl.BlockSpec((None, tile_b, seq), lambda e, i: (e, i, 0)),    # tokens
                pl.BlockSpec((None, tile_b, seq), lambda e, i: (e, i, 0)),    # masks
                pl.BlockSpec((V, D), lambda e, i: (0, 0)),                    # bf16 table
                pl.BlockSpec((None, D, d_out), lambda e, i: (e, 0, 0)),       # bf16 weights
            ],
            out_specs=pl.BlockSpec((None, tile_b, d_out), lambda e, i: (e, i, 0)),
        ),
        compiler_params=pltpu.CompilerParams(
            dimension_semantics=("parallel", "parallel"),   # shards across v7x's 2 TCs
            vmem_limit_bytes=32 * 1024 * 1024,              # raise at production sizes (v5e/v6e)
        ),
    )(tokens2, masks2, table, w_stacked)


# --------------------- kernel 2: in-batch contrastive loss (row-tiled) --------------------
def _loss_kernel(inv_temp, label_smoothing, q_ref, kt_ref, qt_ref, out_ref, acc_ref):
    """Grid = (B // TQ,) over query-row tiles; kT / qT stay resident.

    q_ref   : VMEM (TQ, D) f32 query tile
    kt_ref  : VMEM (D, B)  f32 doc embeddings, pre-transposed (MXU-friendly layout)
    qt_ref  : VMEM (D, B)  f32 query embeddings, pre-transposed (for two-pass stdq)
    out_ref : SMEM (4,)    -> [loss, accuracy, stdq, stdk]
    acc_ref : SMEM (2,)    -> partial [loss_sum, correct_count]
    """
    i = pl.program_id(0)
    n = pl.num_programs(0)
    TQ, D = q_ref.shape
    B = kt_ref.shape[1]

    @pl.when(i == 0)
    def _init():
        acc_ref[0] = jnp.float32(0.0)
        acc_ref[1] = jnp.float32(0.0)

    # scores = (q / T) @ k^T : bf16 x bf16 -> f32 on the MXU, no in-kernel transpose,
    # 1/temperature folded into one scalar multiply of the result.
    q = q_ref[...]                                                            # (TQ, D) f32
    scores = jnp.dot(q.astype(jnp.bfloat16), kt_ref[...].astype(jnp.bfloat16),
                     preferred_element_type=jnp.float32) * inv_temp           # (TQ, B) f32

    col_ids = lax.broadcasted_iota(jnp.int32, (TQ, B), 1)
    labels = i * TQ + lax.broadcasted_iota(jnp.int32, (TQ, 1), 0)             # (TQ, 1)
    is_label = (col_ids == labels).astype(jnp.float32)

    # label-smoothed cross entropy (partial sum over this q-tile)
    m = jnp.max(scores, axis=-1, keepdims=True)
    z = scores - m
    lse = jnp.log(jnp.sum(jnp.exp(z), axis=-1, keepdims=True))
    logp = z - lse                                                            # (TQ, B)
    logp_label = jnp.sum(logp * is_label, axis=-1, keepdims=True)
    logp_mean = jnp.sum(logp, axis=-1, keepdims=True) * (1.0 / B)
    per_ex = -((1.0 - label_smoothing) * logp_label + label_smoothing * logp_mean)
    acc_ref[0] += jnp.sum(per_ex)

    # accuracy: reuse the row max m (first-max index == torch argmax tie-breaking)
    cand = jnp.where(scores == m, col_ids, B)
    pred = jnp.min(cand, axis=-1, keepdims=True)                              # (TQ, 1)
    acc_ref[1] += jnp.sum((pred == labels).astype(jnp.float32))

    @pl.when(i == n - 1)
    def _finalize():
        nm1 = float(max(B - 1, 1))                       # ddof=1, guarded for B == 1
        out_ref[0] = acc_ref[0] * (1.0 / B)              # mean loss
        out_ref[1] = acc_ref[1] * (100.0 / B)            # accuracy (%)
        # two-pass std over the batch axis (lanes) for each of the D features
        qt = qt_ref[...]                                                      # (D, B) f32
        mu_q = jnp.sum(qt, axis=1, keepdims=True) * (1.0 / B)
        varq = jnp.sum((qt - mu_q) ** 2, axis=1, keepdims=True) * (1.0 / nm1)
        out_ref[2] = jnp.sum(jnp.sqrt(varq)) * (1.0 / D)                      # stdq
        kt = kt_ref[...]                                                      # (D, B) f32
        mu_k = jnp.sum(kt, axis=1, keepdims=True) * (1.0 / B)
        vark = jnp.sum((kt - mu_k) ** 2, axis=1, keepdims=True) * (1.0 / nm1)
        out_ref[3] = jnp.sum(jnp.sqrt(vark)) * (1.0 / D)                      # stdk


def inbatch_loss(qemb, kemb_t, qemb_t, *, temperature, label_smoothing, tile_q):
    B, D = qemb.shape
    kernel = functools.partial(_loss_kernel, 1.0 / float(temperature), float(label_smoothing))
    return pl.pallas_call(
        kernel,
        out_shape=jax.ShapeDtypeStruct((4,), jnp.float32),
        grid_spec=pltpu.PrefetchScalarGridSpec(
            num_scalar_prefetch=0,
            grid=(B // tile_q,),
            in_specs=[pl.BlockSpec((tile_q, D), lambda i: (i, 0)),
                      pl.BlockSpec((D, B), lambda i: (0, 0)),     # kT resident
                      pl.BlockSpec((D, B), lambda i: (0, 0))],    # qT resident (std stats)
            out_specs=pl.BlockSpec((4,), lambda i: (0,),
                                   memory_space=pltpu.MemorySpace.SMEM),
            scratch_shapes=[pltpu.SMEM((2,), jnp.float32)],
        ),
        compiler_params=pltpu.CompilerParams(
            dimension_semantics=("arbitrary",),          # sequential: SMEM partial sums
            vmem_limit_bytes=32 * 1024 * 1024,
        ),
    )(qemb, kemb_t, qemb_t)


# ----------------------------- module-level forward ----------------------------
def inbatch_lora_forward(params, q_tokens, q_mask, k_tokens, k_mask, stats_prefix=""):
    B, S = q_tokens.shape

    # Fold LoRA delta into the doc projection once (eval-mode; peft scaling = alpha / r).
    w_doc_eff = params["w_doc"] + LORA_SCALING * (params["lora_b"] @ params["lora_a"])
    # Pre-transpose to (D_in, D_out) so the kernel never transposes; bf16 for MXU + DMA.
    w_stacked = jnp.stack([params["w_query"].T, w_doc_eff.T]).astype(jnp.bfloat16)
    # bf16 table: halves VMEM residency and HBM->VMEM DMA.
    table = params["emb_table"].astype(jnp.bfloat16)

    # Stack query/doc tokens & masks along a leading encoder axis (VMEM-tiled inputs).
    tokens2 = jnp.stack([q_tokens, k_tokens]).astype(jnp.int32)      # (2, B, S)
    masks2 = jnp.stack([q_mask, k_mask]).astype(jnp.float32)         # (2, B, S)

    # Large tiles (review): min(B, 256); B must divide evenly.
    tile_b = B if B <= 256 else 256
    assert B % tile_b == 0
    emb = encode_pair(table, w_stacked, tokens2, masks2, batch=B, seq=S, tile_b=tile_b)
    qemb, kemb = emb[0], emb[1]                                      # (B, Dout) f32 each

    # single-device: dist gather(kemb) == kemb, rank == 0
    tile_q = B if B <= 256 else 256
    stats = inbatch_loss(qemb, kemb.T, qemb.T, temperature=TEMPERATURE,
                         label_smoothing=LABEL_SMOOTHING, tile_q=tile_q)
    loss, acc, stdq, stdk = stats[0], stats[1], stats[2], stats[3]

    bsz = B
    if len(stats_prefix) > 0:
        stats_prefix = stats_prefix + "/"
    iter_stats = {
        f"{stats_prefix}loss": (loss, bsz),
        f"{stats_prefix}accuracy": (acc, bsz),
        f"{stats_prefix}stdq": (stdq, bsz),
        f"{stats_prefix}stdk": (stdk, bsz),
    }
    return loss, iter_stats, qemb, kemb


# ----------------------------- pure-JAX references ------------------------------
def _ref_loss(qemb, kemb):
    # Mirrors the kernel's bf16 scores matmul (review: widen/match instead of regressing).
    B = qemb.shape[0]
    scores = jnp.dot(qemb.astype(jnp.bfloat16), kemb.astype(jnp.bfloat16).T,
                     preferred_element_type=jnp.float32) / TEMPERATURE
    logp = jax.nn.log_softmax(scores, axis=-1)
    tgt = (1.0 - LABEL_SMOOTHING) * jnp.eye(B) + LABEL_SMOOTHING / B
    loss = jnp.mean(-jnp.sum(tgt * logp, axis=-1))
    acc = 100.0 * jnp.mean((jnp.argmax(scores, -1) == jnp.arange(B)).astype(jnp.float32))
    stdq = jnp.mean(jnp.std(qemb, axis=0, ddof=1))
    stdk = jnp.mean(jnp.std(kemb, axis=0, ddof=1))
    return loss, acc, stdq, stdk


if __name__ == "__main__":
    bsz, seq, hidden, vocab = 16, 8, 32, 64

    key = jax.random.PRNGKey(0)
    k_emb, k_wq, k_wd, k_la, k_lb, k_qt, k_kt = jax.random.split(key, 7)

    params = {
        "emb_table": 0.02 * jax.random.normal(k_emb, (vocab, hidden), jnp.float32),
        "w_query":   0.02 * jax.random.normal(k_wq, (hidden, hidden), jnp.float32),
        "w_doc":     0.02 * jax.random.normal(k_wd, (hidden, hidden), jnp.float32),
        # peft 'gaussian' init: A ~ N(0, .), B = 0.  B nonzero here to exercise the LoRA fold.
        "lora_a":    0.02 * jax.random.normal(k_la, (LORA_R, hidden), jnp.float32),
        "lora_b":    0.02 * jax.random.normal(k_lb, (hidden, LORA_R), jnp.float32),
    }

    q_tokens = jax.random.randint(k_qt, (bsz, seq), 0, vocab, dtype=jnp.int32)
    k_tokens = jax.random.randint(k_kt, (bsz, seq), 0, vocab, dtype=jnp.int32)
    pos = jnp.arange(seq)[None, :]
    q_mask = (pos < (seq - jnp.arange(bsz)[:, None] % 3)).astype(jnp.float32)
    k_mask = (pos < (seq - (jnp.arange(bsz)[:, None] + 1) % 3)).astype(jnp.float32)

    loss, iter_stats, qemb, kemb = inbatch_lora_forward(
        params, q_tokens, q_mask, k_tokens, k_mask, stats_prefix="train")
    jax.block_until_ready(loss)

    # --- correctness: fused gather+pool+projection vs plain JAX (bf16 table / weights) ---
    def ref_encode(tokens, mask, w_eff):
        table_f32 = params["emb_table"].astype(jnp.bfloat16).astype(jnp.float32)
        emb_tok = jnp.take(table_f32, tokens, axis=0)                 # (B, S, D)
        msk = mask.astype(jnp.float32)
        den = jnp.maximum(jnp.sum(msk, axis=1, keepdims=True), 1.0)
        pooled = jnp.sum(emb_tok * msk[:, :, None], axis=1) / den
        return jnp.dot(pooled.astype(jnp.bfloat16), w_eff.T.astype(jnp.bfloat16),
                       preferred_element_type=jnp.float32)

    w_doc_eff = params["w_doc"] + LORA_SCALING * (params["lora_b"] @ params["lora_a"])
    ref_q = ref_encode(q_tokens, q_mask, params["w_query"])
    ref_k = ref_encode(k_tokens, k_mask, w_doc_eff)
    assert jnp.allclose(qemb, ref_q, rtol=2e-2, atol=5e-5), "qemb mismatch"
    assert jnp.allclose(kemb, ref_k, rtol=2e-2, atol=5e-5), "kemb mismatch"

    # --- correctness: loss / stats vs plain JAX on the same embeddings ---
    ref_loss, ref_acc, ref_stdq, ref_stdk = _ref_loss(qemb, kemb)
    assert jnp.allclose(loss, ref_loss, rtol=2e-3, atol=2e-5), (loss, ref_loss)
    assert jnp.allclose(iter_stats["train/accuracy"][0], ref_acc, atol=1e-3)
    assert jnp.allclose(iter_stats["train/stdq"][0], ref_stdq, rtol=2e-3, atol=2e-6)
    assert jnp.allclose(iter_stats["train/stdk"][0], ref_stdk, rtol=2e-3, atol=2e-6)

    print("KERNEL_OK")
</pallas_src>

<mosaic_0001>
module attributes {stable_mosaic.version = 11 : i64} {
  func.func @_encoder_kernel(%arg0: i32, %arg1: i32, %arg2: memref<1x16x8xi32, #tpu.memory_space<vmem>>, %arg3: memref<1x16x8xf32, #tpu.memory_space<vmem>>, %arg4: memref<64x32xbf16, #tpu.memory_space<vmem>>, %arg5: memref<1x32x32xbf16, #tpu.memory_space<vmem>>, %arg6: memref<1x16x32xf32, #tpu.memory_space<vmem>>) attributes {dimension_semantics = [#tpu.dimension_semantics<parallel>, #tpu.dimension_semantics<parallel>], iteration_bounds = array<i64: 2, 1>, scalar_prefetch = 0 : i64, scratch_operands = 0 : i64, tpu.core_type = #tpu.core_type<tc>, window_params = [{transform_indices = @transform_0, window_bounds = array<i64: 1, 16, 8>}, {transform_indices = @transform_1, window_bounds = array<i64: 1, 16, 8>}, {pipeline_mode = #tpu.pipeline_mode<synchronous>, transform_indices = @transform_2, window_bounds = array<i64: 64, 32>}, {transform_indices = @transform_3, window_bounds = array<i64: 1, 32, 32>}, {transform_indices = @transform_4, window_bounds = array<i64: 1, 16, 32>}]} {
    %c0 = arith.constant 0 : index
    %c0_0 = arith.constant 0 : index
    %c0_1 = arith.constant 0 : index
    %0 = vector.load %arg2[%c0, %c0_0, %c0_1] : memref<1x16x8xi32, #tpu.memory_space<vmem>>, vector<1x16x8xi32>
    %1 = vector.shape_cast %0 : vector<1x16x8xi32> to vector<16x8xi32>
    %c0_2 = arith.constant 0 : index
    %c0_3 = arith.constant 0 : index
    %c0_4 = arith.constant 0 : index
    %2 = vector.load %arg3[%c0_2, %c0_3, %c0_4] : memref<1x16x8xf32, #tpu.memory_space<vmem>>, vector<1x16x8xf32>
    %3 = vector.shape_cast %2 : vector<1x16x8xf32> to vector<16x8xf32>
    %cst = arith.constant dense<0.000000e+00> : vector<16xf32>
    %4 = vector.multi_reduction <add>, %3, %cst [1] : vector<16x8xf32> to vector<16xf32>
    %5 = vector.shape_cast %4 : vector<16xf32> to vector<16x1xf32>
    %cst_5 = arith.constant 1.000000e+00 : f32
    %6 = vector.broadcast %cst_5 : f32 to vector<16x1xf32>
    %7 = arith.maximumf %5, %6 : vector<16x1xf32>
    %8 = tpu.iota {dimensions = array<i32: 1>} : vector<16x64xi32>
    %cst_6 = arith.constant 0.000000e+00 : f32
    %9 = vector.broadcast %cst_6 : f32 to vector<16x64xf32>
    %10 = vector.extract_strided_slice %3 {offsets = [0, 0], sizes = [16, 1], strides = [1, 1]} : vector<16x8xf32> to vector<16x1xf32>
    %11 = vector.extract_strided_slice %1 {offsets = [0, 0], sizes = [16, 1], strides = [1, 1]} : vector<16x8xi32> to vector<16x1xi32>
    %12 = vector.broadcast %11 : vector<16x1xi32> to vector<16x64xi32>
    %13 = arith.cmpi eq, %12, %8 : vector<16x64xi32>
    %14 = arith.extui %13 : vector<16x64xi1> to vector<16x64xi32>
    %15 = arith.sitofp %14 : vector<16x64xi32> to vector<16x64xf32>
    %16 = vector.broadcast %10 : vector<16x1xf32> to vector<16x64xf32>
    %17 = arith.mulf %16, %15 : vector<16x64xf32>
    %18 = arith.addf %9, %17 : vector<16x64xf32>
    %19 = vector.extract_strided_slice %3 {offsets = [0, 1], sizes = [16, 1], strides = [1, 1]} : vector<16x8xf32> to vector<16x1xf32>
    %20 = vector.extract_strided_slice %1 {offsets = [0, 1], sizes = [16, 1], strides = [1, 1]} : vector<16x8xi32> to vector<16x1xi32>
    %21 = vector.broadcast %20 : vector<16x1xi32> to vector<16x64xi32>
    %22 = arith.cmpi eq, %21, %8 : vector<16x64xi32>
    %23 = arith.extui %22 : vector<16x64xi1> to vector<16x64xi32>
    %24 = arith.sitofp %23 : vector<16x64xi32> to vector<16x64xf32>
    %25 = vector.broadcast %19 : vector<16x1xf32> to vector<16x64xf32>
    %26 = arith.mulf %25, %24 : vector<16x64xf32>
    %27 = arith.addf %18, %26 : vector<16x64xf32>
    %28 = vector.extract_strided_slice %3 {offsets = [0, 2], sizes = [16, 1], strides = [1, 1]} : vector<16x8xf32> to vector<16x1xf32>
    %29 = vector.extract_strided_slice %1 {offsets = [0, 2], sizes = [16, 1], strides = [1, 1]} : vector<16x8xi32> to vector<16x1xi32>
    %30 = vector.broadcast %29 : vector<16x1xi32> to vector<16x64xi32>
    %31 = arith.cmpi eq, %30, %8 : vector<16x64xi32>
    %32 = arith.extui %31 : vector<16x64xi1> to vector<16x64xi32>
    %33 = arith.sitofp %32 : vector<16x64xi32> to vector<16x64xf32>
    %34 = vector.broadcast %28 : vector<16x1xf32> to vector<16x64xf32>
    %35 = arith.mulf %34, %33 : vector<16x64xf32>
    %36 = arith.addf %27, %35 : vector<16x64xf32>
    %37 = vector.extract_strided_slice %3 {offsets = [0, 3], sizes = [16, 1], strides = [1, 1]} : vector<16x8xf32> to vector<16x1xf32>
    %38 = vector.extract_strided_slice %1 {offsets = [0, 3], sizes = [16, 1], strides = [1, 1]} : vector<16x8xi32> to vector<16x1xi32>
    %39 = vector.broadcast %38 : vector<16x1xi32> to vector<16x64xi32>
    %40 = arith.cmpi eq, %39, %8 : vector<16x64xi32>
    %41 = arith.extui %40 : vector<16x64xi1> to vector<16x64xi32>
    %42 = arith.sitofp %41 : vector<16x64xi32> to vector<16x64xf32>
    %43 = vector.broadcast %37 : vector<16x1xf32> to vector<16x64xf32>
    %44 = arith.mulf %43, %42 : vector<16x64xf32>
    %45 = arith.addf %36, %44 : vector<16x64xf32>
    %46 = vector.extract_strided_slice %3 {offsets = [0, 4], sizes = [16, 1], strides = [1, 1]} : vector<16x8xf32> to vector<16x1xf32>
    %47 = vector.extract_strided_slice %1 {offsets = [0, 4], sizes = [16, 1], strides = [1, 1]} : vector<16x8xi32> to vector<16x1xi32>
    %48 = vector.broadcast %47 : vector<16x1xi32> to vector<16x64xi32>
    %49 = arith.cmpi eq, %48, %8 : vector<16x64xi32>
    %50 = arith.extui %49 : vector<16x64xi1> to vector<16x64xi32>
    %51 = arith.sitofp %50 : vector<16x64xi32> to vector<16x64xf32>
    %52 = vector.broadcast %46 : vector<16x1xf32> to vector<16x64xf32>
    %53 = arith.mulf %52, %51 : vector<16x64xf32>
    %54 = arith.addf %45, %53 : vector<16x64xf32>
    %55 = vector.extract_strided_slice %3 {offsets = [0, 5], sizes = [16, 1], strides = [1, 1]} : vector<16x8xf32> to vector<16x1xf32>
    %56 = vector.extract_strided_slice %1 {offsets = [0, 5], sizes = [16, 1], strides = [1, 1]} : vector<16x8xi32> to vector<16x1xi32>
    %57 = vector.broadcast %56 : vector<16x1xi32> to vector<16x64xi32>
    %58 = arith.cmpi eq, %57, %8 : vector<16x64xi32>
    %59 = arith.extui %58 : vector<16x64xi1> to vector<16x64xi32>
    %60 = arith.sitofp %59 : vector<16x64xi32> to vector<16x64xf32>
    %61 = vector.broadcast %55 : vector<16x1xf32> to vector<16x64xf32>
    %62 = arith.mulf %61, %60 : vector<16x64xf32>
    %63 = arith.addf %54, %62 : vector<16x64xf32>
    %64 = vector.extract_strided_slice %3 {offsets = [0, 6], sizes = [16, 1], strides = [1, 1]} : vector<16x8xf32> to vector<16x1xf32>
    %65 = vector.extract_strided_slice %1 {offsets = [0, 6], sizes = [16, 1], strides = [1, 1]} : vector<16x8xi32> to vector<16x1xi32>
    %66 = vector.broadcast %65 : vector<16x1xi32> to vector<16x64xi32>
    %67 = arith.cmpi eq, %66, %8 : vector<16x64xi32>
    %68 = arith.extui %67 : vector<16x64xi1> to vector<16x64xi32>
    %69 = arith.sitofp %68 : vector<16x64xi32> to vector<16x64xf32>
    %70 = vector.broadcast %64 : vector<16x1xf32> to vector<16x64xf32>
    %71 = arith.mulf %70, %69 : vector<16x64xf32>
    %72 = arith.addf %63, %71 : vector<16x64xf32>
    %73 = vector.extract_strided_slice %3 {offsets = [0, 7], sizes = [16, 1], strides = [1, 1]} : vector<16x8xf32> to vector<16x1xf32>
    %74 = vector.extract_strided_slice %1 {offsets = [0, 7], sizes = [16, 1], strides = [1, 1]} : vector<16x8xi32> to vector<16x1xi32>
    %75 = vector.broadcast %74 : vector<16x1xi32> to vector<16x64xi32>
    %76 = arith.cmpi eq, %75, %8 : vector<16x64xi32>
    %77 = arith.extui %76 : vector<16x64xi1> to vector<16x64xi32>
    %78 = arith.sitofp %77 : vector<16x64xi32> to vector<16x64xf32>
    %79 = vector.broadcast %73 : vector<16x1xf32> to vector<16x64xf32>
    %80 = arith.mulf %79, %78 : vector<16x64xf32>
    %81 = arith.addf %72, %80 : vector<16x64xf32>
    %82 = arith.truncf %81 : vector<16x64xf32> to vector<16x64xbf16>
    %c0_7 = arith.constant 0 : index
    %c0_8 = arith.constant 0 : index
    %83 = vector.load %arg4[%c0_7, %c0_8] : memref<64x32xbf16, #tpu.memory_space<vmem>>, vector<64x32xbf16>
    %cst_9 = arith.constant dense<0.000000e+00> : vector<16x32xf32>
    %84 = tpu.matmul %82, %83, %cst_9 {dimension_numbers = #tpu.dot_dimension_numbers<[1], [0], [0], [1], [0, 0, 1, 1], [], []>} : vector<16x64xbf16>, vector<64x32xbf16>, vector<16x32xf32> -> vector<16x32xf32>
    %85 = tpu.reciprocal %7 {approx = true} : vector<16x1xf32> -> vector<16x1xf32>
    %86 = vector.broadcast %85 : vector<16x1xf32> to vector<16x32xf32>
    %87 = arith.mulf %84, %86 : vector<16x32xf32>
    %88 = arith.truncf %87 : vector<16x32xf32> to vector<16x32xbf16>
    %c0_10 = arith.constant 0 : index
    %c0_11 = arith.constant 0 : index
    %c0_12 = arith.constant 0 : index
    %89 = vector.load %arg5[%c0_10, %c0_11, %c0_12] : memref<1x32x32xbf16, #tpu.memory_space<vmem>>, vector<1x32x32xbf16>
    %90 = vector.shape_cast %89 : vector<1x32x32xbf16> to vector<32x32xbf16>
    %cst_13 = arith.constant dense<0.000000e+00> : vector<16x32xf32>
    %91 = tpu.matmul %88, %90, %cst_13 {dimension_numbers = #tpu.dot_dimension_numbers<[1], [0], [0], [1], [0, 0, 1, 1], [], []>} : vector<16x32xbf16>, vector<32x32xbf16>, vector<16x32xf32> -> vector<16x32xf32>
    %c0_14 = arith.constant 0 : index
    %c0_15 = arith.constant 0 : index
    %c0_16 = arith.constant 0 : index
    %92 = vector.load %arg6[%c0_14, %c0_15, %c0_16] : memref<1x16x32xf32, #tpu.memory_space<vmem>>, vector<1x16x32xf32>
    %93 = vector.shape_cast %92 : vector<1x16x32xf32> to vector<16x32xf32>
    %94 = vector.shape_cast %91 : vector<16x32xf32> to vector<1x16x32xf32>
    tpu.vector_store %arg6[%c0_14, %c0_15, %c0_16], %94 {strides = array<i32>} : memref<1x16x32xf32, #tpu.memory_space<vmem>>, vector<1x16x32xf32>,
    return
  }
  func.func @transform_0(%arg0: i32, %arg1: i32) -> (i32, i32, i32) {
    %c0_i32 = arith.constant 0 : i32
    %c0_i32_0 = arith.constant 0 : i32
    return %arg0, %arg1, %c0_i32 : i32, i32, i32
  }
  func.func @transform_1(%arg0: i32, %arg1: i32) -> (i32, i32, i32) {
    %c0_i32 = arith.constant 0 : i32
    %c0_i32_0 = arith.constant 0 : i32
    return %arg0, %arg1, %c0_i32 : i32, i32, i32
  }
  func.func @transform_2(%arg0: i32, %arg1: i32) -> (i32, i32) {
    %c0_i32 = arith.constant 0 : i32
    %c0_i32_0 = arith.constant 0 : i32
    %c0_i32_1 = arith.constant 0 : i32
    return %c0_i32, %c0_i32_0 : i32, i32
  }
  func.func @transform_3(%arg0: i32, %arg1: i32) -> (i32, i32, i32) {
    %c0_i32 = arith.constant 0 : i32
    %c0_i32_0 = arith.constant 0 : i32
    %c0_i32_1 = arith.constant 0 : i32
    return %arg0, %c0_i32, %c0_i32_0 : i32, i32, i32
  }
  func.func @transform_4(%arg0: i32, %arg1: i32) -> (i32, i32, i32) {
    %c0_i32 = arith.constant 0 : i32
    %c0_i32_0 = arith.constant 0 : i32
    return %arg0, %arg1, %c0_i32 : i32, i32, i32
  }
}

</mosaic_0001>

<llo_original>
// kernel: tpu_custom_call.1
$region0: #{tpu_custom_call.1}
  #allocation0 [shape = 'u32[]', space=smem, size = 0x4, offset = 0x4, fixed_abs, tag = 'smem constant byte address 0x4 - core index']
  #allocation1 [shape = 'u32[144,128]{1,0:T(1,128)}', space=vmem, size = 0x12000, scoped, tag = 'internal scratch']
  %s0 = inlined_call_operand.vmem [shape: s32[2,16,8], index: 0, kind: input, shape index: {}]
  %s1 = inlined_call_operand.vmem [shape: f32[2,16,8], index: 1, kind: input, shape index: {}]
  %s2 = inlined_call_operand.vmem [shape: bf16[64,32], index: 2, kind: input, shape index: {}]
  %s3 = inlined_call_operand.vmem [shape: bf16[2,32,32], index: 3, kind: input, shape index: {}]
  %s4 = inlined_call_operand.hbm [shape: f32[2,16,32], index: 4, kind: output, shape index: {}]
  %s5 = sld [smem:[#allocation0]]
  $region49: #{tpu_custom_call.1} parent=0
    _
  %s7 = ssub.s32 1, %s5
  %s8 = scalar_select 0, %s7, %s5
  $region1: #{tpu_custom_call.1} parent=0
    #allocation2 [shape = 'u8[16384]{0}', space=vmem, size = 0x4000, scoped, tag = 'output window, operand 0']
    #allocation3 [shape = 's32[2]{0}', space=sflag, size = 0x8, scoped, tag = 'scoped memory for tpu_custom_call.1']
    %9 = vsyncpa [#allocation3], 0
    %s10 = scalar_lea.sflag [#allocation3], 1
    %11 = vsyncpa %s10, 0
    loop: start=0, step=1, limit=4
    $region2: #{tpu_custom_call.1} parent=1 // loop_pre_header
      _
    $region3: #{tpu_custom_call.1} parent=1 // loop_header
      %s13 = sphi 0, %s17
      %p14 = scmp.ge.s32.totalorder %s13, 4
      %s20 = sphi 0, %s32
      %s21 = sphi 0, %s28
      %s22 = sphi 0, %s20
      %s23 = sphi 0, %s21
      %s24 = sphi 0, %s22
      %s25 = sphi 0, %s23
      %s37 = sphi 0, %s39
      %s40 = sphi 0, %s37
      %s41 = sphi 0, %s40
      %s57 = sphi 0, %s41
      %s65 = sphi 0, %s67
      %s68 = sphi 0, %s65
      %s69 = sphi 0, %s68
      %s85 = sphi 0, %s69
      %s89 = sphi 0, %s89
      %s91 = sphi 0, %s89
      %s92 = sphi 0, %s91
      %s106 = sphi 0, %s92
      %s112 = sphi 0, %s114
      %s115 = sphi 0, %s112
      %s116 = sphi 0, %s115
      %s132 = sphi 0, %s116
      %s140 = sphi 0, %s142
      %s143 = sphi 0, %s140
      %s144 = sphi 0, %s143
      %s160 = sphi 0, %s144
    $region4: #{tpu_custom_call.1} parent=1 // loop_header_branch
      %16 = sbr.rel (%p14) target = $region8
    $region5: #{tpu_custom_call.1} parent=1 // loop_body
      %s18 = ssub.s32 %s13, 1
      %s19 = ssub.s32 %s13, 2
      %s26 = sadd.s32 1, %s21
      %p27 = scmp.ge.s32.totalorder %s26, 1
      %s28 = scalar_select %p27, 0, %s26
      %s29 = sadd.s32 1, %s20
      %s30 = scalar_select %p27, %s29, %s20
      %p31 = scmp.ge.s32.totalorder %s30, 2
      %s32 = scalar_select %p31, 0, %s30
      %s33 = ssub.s32 %s20, %s32
      %s34 = ssub.s32 %s21, %s28
      %s35 = sor.u32 %s33, %s34
      %p36 = scmp.eq.s32.totalorder %s35, 0
      %s38 = sadd.s32 %s37, 1
      %s39 = scalar_select %p36, %s37, %s38
      %p42 = pneg %p36
      %p43 = scmp.eq.s32.totalorder %s13, 1
      %p44 = por %p42, %p43
      %p45 = scmp.ne.s32.totalorder %s37, %s40
      %p46 = scmp.eq.s32.totalorder %s13, 0
      %p47 = por %p45, %p46
      %p48 = scmp.ne.s32.totalorder %s37, %s40
      %p49 = scmp.eq.s32.totalorder %s18, 1
      %p50 = por %p48, %p49
      %p51 = scmp.ne.s32.totalorder %s40, %s41
      %p52 = scmp.eq.s32.totalorder %s18, 0
      %p53 = por %p51, %p52
      %p54 = scmp.ne.s32.totalorder %s40, %s41
      %p55 = scmp.eq.s32.totalorder %s19, 1
      %p56 = por %p54, %p55
      %p58 = scmp.ne.s32.totalorder %s41, %s57
      %p59 = scmp.eq.s32.totalorder %s19, 0
      %p60 = por %p58, %p59
      %s61 = ssub.s32 %s20, %s32
      %s62 = ssub.s32 %s21, %s28
      %s63 = sor.u32 %s61, %s62
      %p64 = scmp.eq.s32.totalorder %s63, 0
      %s66 = sadd.s32 %s65, 1
      %s67 = scalar_select %p64, %s65, %s66
      %p70 = pneg %p64
      %p71 = scmp.eq.s32.totalorder %s13, 1
      %p72 = por %p70, %p71
      %p73 = scmp.ne.s32.totalorder %s65, %s68
      %p74 = scmp.eq.s32.totalorder %s13, 0
      %p75 = por %p73, %p74
      %p76 = scmp.ne.s32.totalorder %s65, %s68
      %p77 = scmp.eq.s32.totalorder %s18, 1
      %p78 = por %p76, %p77
      %p79 = scmp.ne.s32.totalorder %s68, %s69
      %p80 = scmp.eq.s32.totalorder %s18, 0
      %p81 = por %p79, %p80
      %p82 = scmp.ne.s32.totalorder %s68, %s69
      %p83 = scmp.eq.s32.totalorder %s19, 1
      %p84 = por %p82, %p83
      %p86 = scmp.ne.s32.totalorder %s69, %s85
      %p87 = scmp.eq.s32.totalorder %s19, 0
      %p88 = por %p86, %p87
      %s90 = sadd.s32 %s89, 1
      %p93 = scmp.eq.s32.totalorder %s13, 1
      %p94 = scmp.ne.s32.totalorder %s89, %s91
      %p95 = scmp.eq.s32.totalorder %s13, 0
      %p96 = por %p94, %p95
      %p97 = scmp.ne.s32.totalorder %s89, %s91
      %p98 = scmp.eq.s32.totalorder %s18, 1
      %p99 = por %p97, %p98
      %p100 = scmp.ne.s32.totalorder %s91, %s92
      %p101 = scmp.eq.s32.totalorder %s18, 0
      %p102 = por %p100, %p101
      %p103 = scmp.ne.s32.totalorder %s91, %s92
      %p104 = scmp.eq.s32.totalorder %s19, 1
      %p105 = por %p103, %p104
      %p107 = scmp.ne.s32.totalorder %s92, %s106
      %p108 = scmp.eq.s32.totalorder %s19, 0
      %p109 = por %p107, %p108
      %s110 = ssub.s32 %s20, %s32
      %p111 = scmp.eq.s32.totalorder %s110, 0
      %s113 = sadd.s32 %s112, 1
      %s114 = scalar_select %p111, %s112, %s113
      %p117 = pneg %p111
      %p118 = scmp.eq.s32.totalorder %s13, 1
      %p119 = por %p117, %p118
      %p120 = scmp.ne.s32.totalorder %s112, %s115
      %p121 = scmp.eq.s32.totalorder %s13, 0
      %p122 = por %p120, %p121
      %p123 = scmp.ne.s32.totalorder %s112, %s115
      %p124 = scmp.eq.s32.totalorder %s18, 1
      %p125 = por %p123, %p124
      %p126 = scmp.ne.s32.totalorder %s115, %s116
      %p127 = scmp.eq.s32.totalorder %s18, 0
      %p128 = por %p126, %p127
      %p129 = scmp.ne.s32.totalorder %s115, %s116
      %p130 = scmp.eq.s32.totalorder %s19, 1
      %p131 = por %p129, %p130
      %p133 = scmp.ne.s32.totalorder %s116, %s132
      %p134 = scmp.eq.s32.totalorder %s19, 0
      %p135 = por %p133, %p134
      %s136 = ssub.s32 %s20, %s32
      %s137 = ssub.s32 %s21, %s28
      %s138 = sor.u32 %s136, %s137
      %p139 = scmp.eq.s32.totalorder %s138, 0
      %s141 = sadd.s32 %s140, 1
      %s142 = scalar_select %p139, %s140, %s141
      %p145 = pneg %p139
      %p146 = scmp.eq.s32.totalorder %s13, 1
      %p147 = por %p145, %p146
      %p148 = scmp.ne.s32.totalorder %s140, %s143
      %p149 = scmp.eq.s32.totalorder %s13, 0
      %p150 = por %p148, %p149
      %p151 = scmp.ne.s32.totalorder %s140, %s143
      %p152 = scmp.eq.s32.totalorder %s18, 1
      %p153 = por %p151, %p152
      %p154 = scmp.ne.s32.totalorder %s143, %s144
      %p155 = scmp.eq.s32.totalorder %s18, 0
      %p156 = por %p154, %p155
      %p157 = scmp.ne.s32.totalorder %s143, %s144
      %p158 = scmp.eq.s32.totalorder %s19, 1
      %p159 = por %p157, %p158
      %p161 = scmp.ne.s32.totalorder %s144, %s160
      %p162 = scmp.eq.s32.totalorder %s19, 0
      %p163 = por %p161, %p162
      %p164 = scmp.le.s32.totalorder 1, %s13
      %p165 = scmp.lt.s32.totalorder %s13, 3
      %p166 = pnand %p164, %p165
      %p167 = pneg %p166
      // Predicated region
      $region9: #{tpu_custom_call.1} parent=5 // pred_check
        _
      $region10: #{tpu_custom_call.1} parent=5 // pred_check_branch
        %169 = sbr.rel (%p166) target = $region12
      $region11: #{tpu_custom_call.1} parent=5 // pred_region
        %s170 = ssub.s32 %s13, 1
        // Predicated region
        $region13: #{tpu_custom_call.1} parent=11 // pred_check
          %p171 = pneg %p102
        $region14: #{tpu_custom_call.1} parent=11 // pred_check_branch
          %173 = sbr.rel (%p171) target = $region16
        $region15: #{tpu_custom_call.1} parent=11 // pred_region
          _
        $region16: #{tpu_custom_call.1} parent=11 // pred_fallthru
          _
      $region12: #{tpu_custom_call.1} parent=5 // pred_fallthru
        _
      %p174 = scmp.lt.s32.totalorder %s13, 2
      // Predicated region
      $region17: #{tpu_custom_call.1} parent=5 // pred_check
        %p175 = pneg %p174
      $region18: #{tpu_custom_call.1} parent=5 // pred_check_branch
        %177 = sbr.rel (%p175) target = $region20
      $region19: #{tpu_custom_call.1} parent=5 // pred_region
        // Predicated region
        $region21: #{tpu_custom_call.1} parent=19 // pred_check
          %p178 = pneg %p47
        $region22: #{tpu_custom_call.1} parent=19 // pred_check_branch
          %180 = sbr.rel (%p178) target = $region24
        $region23: #{tpu_custom_call.1} parent=19 // pred_region
          %s181 = smul.u32 2, %s21
          %p182 = scmp.lt.s32.totalorder %s20, 1
          %s183 = scalar_select %p182, %s20, 1
          %p184 = scmp.lt.s32.totalorder %s181, 1
          %s185 = scalar_select %p184, %s181, 1
          %s186 = smul.addr %s183, 2
          %s187 = sadd.s32 %s185, %s186
          %s188 = smul.addr %s187, 8
          %s189 = scalar_lea.vmem %s0, %s188
          %s190 = smul.u32 2, %s21
        $region24: #{tpu_custom_call.1} parent=19 // pred_fallthru
          _
        // Predicated region
        $region25: #{tpu_custom_call.1} parent=19 // pred_check
          %p191 = pneg %p75
        $region26: #{tpu_custom_call.1} parent=19 // pred_check_branch
          %193 = sbr.rel (%p191) target = $region28
        $region27: #{tpu_custom_call.1} parent=19 // pred_region
          %s194 = smul.u32 2, %s21
          %p195 = scmp.lt.s32.totalorder %s20, 1
          %s196 = scalar_select %p195, %s20, 1
          %p197 = scmp.lt.s32.totalorder %s194, 1
          %s198 = scalar_select %p197, %s194, 1
          %s199 = smul.addr %s196, 2
          %s200 = sadd.s32 %s198, %s199
          %s201 = smul.addr %s200, 8
          %s202 = scalar_lea.vmem %s1, %s201
          %s203 = smul.u32 2, %s21
        $region28: #{tpu_custom_call.1} parent=19 // pred_fallthru
          _
        // Predicated region
        $region29: #{tpu_custom_call.1} parent=19 // pred_check
          %p204 = pneg %p122
        $region30: #{tpu_custom_call.1} parent=19 // pred_check_branch
          %206 = sbr.rel (%p204) target = $region32
        $region31: #{tpu_custom_call.1} parent=19 // pred_region
          %p207 = scmp.lt.s32.totalorder %s20, 1
          %s208 = scalar_select %p207, %s20, 1
          %s209 = smul.addr %s208, 4
          %s210 = smul.addr %s209, 4
          %s211 = scalar_lea.vmem %s3, %s210
        $region32: #{tpu_custom_call.1} parent=19 // pred_fallthru
          _
      $region20: #{tpu_custom_call.1} parent=5 // pred_fallthru
        _
      %p212 = scmp.le.s32.totalorder 1, %s13
      %p213 = scmp.lt.s32.totalorder %s13, 3
      %p214 = pnand %p212, %p213
      %p215 = pneg %p214
      // Predicated region
      $region33: #{tpu_custom_call.1} parent=5 // pred_check
        _
      $region34: #{tpu_custom_call.1} parent=5 // pred_check_branch
        %217 = sbr.rel (%p214) target = $region36
      $region35: #{tpu_custom_call.1} parent=5 // pred_region
        %s218 = ssub.s32 %s13, 1
        %s219 = smul.u32 2, %s23
        %p220 = scmp.lt.s32.totalorder %s22, 1
        %s221 = scalar_select %p220, %s22, 1
        %p222 = scmp.lt.s32.totalorder %s219, 1
        %s223 = scalar_select %p222, %s219, 1
        %s224 = smul.addr %s221, 2
        %s225 = sadd.s32 %s223, %s224
        %s226 = smul.addr %s225, 8
        %s227 = scalar_lea.vmem %s0, %s226
        %p228 = pneg %p53
        %p229 = pneg %p50
        %s230 = smul.u32 2, %s23
        %p231 = scmp.lt.s32.totalorder %s22, 1
        %s232 = scalar_select %p231, %s22, 1
        %p233 = scmp.lt.s32.totalorder %s230, 1
        %s234 = scalar_select %p233, %s230, 1
        %s235 = smul.addr %s232, 2
        %s236 = sadd.s32 %s234, %s235
        %s237 = smul.addr %s236, 8
        %s238 = scalar_lea.vmem %s1, %s237
        %p239 = pneg %p81
        %p240 = pneg %p78
        %p241 = pneg %p102
        %p242 = pneg %p99
        %p243 = scmp.lt.s32.totalorder %s22, 1
        %s244 = scalar_select %p243, %s22, 1
        %s245 = smul.addr %s244, 4
        %s246 = smul.addr %s245, 4
        %s247 = scalar_lea.vmem %s3, %s246
        %p248 = pneg %p128
        %p249 = pneg %p125
        %p250 = pneg %p156
        %p251 = pneg %p153
        %s252 = sand.u32 %s143, 1
        %s253 = scalar_lea.sflag [#allocation3], %s252
        %s254 = sand.u32 %s143, 1
        %s255 = smul.addr %s254, 16
        %s256 = scalar_lea.vmem [#allocation2], %s255
        %s257 = smul.u32 2, %s23
        %p258 = scmp.lt.s32.totalorder %s22, 1
        %s259 = scalar_select %p258, %s22, 1
        %p260 = scmp.lt.s32.totalorder %s257, 1
        %s261 = scalar_select %p260, %s257, 1
        %s262 = smul.addr %s259, 2
        %s263 = sadd.s32 %s261, %s262
        %s264 = smul.addr %s263, 8
        %s265 = scalar_lea.vmem %s0, %s264
        %s266 = smul.u32 2, %s23
        %s267 = smul.u32 2, %s23
        %p268 = scmp.lt.s32.totalorder %s22, 1
        %s269 = scalar_select %p268, %s22, 1
        %p270 = scmp.lt.s32.totalorder %s267, 1
        %s271 = scalar_select %p270, %s267, 1
        %s272 = smul.addr %s269, 2
        %s273 = sadd.s32 %s271, %s272
        %s274 = smul.addr %s273, 8
        %s275 = scalar_lea.vmem %s1, %s274
        %s276 = smul.u32 2, %s23
        %p277 = scmp.lt.s32.totalorder %s22, 1
        %s278 = scalar_select %p277, %s22, 1
        %s279 = smul.addr %s278, 4
        %s280 = smul.addr %s279, 4
        %s281 = scalar_lea.vmem %s3, %s280
        %s282 = smul.u32 2, %s23
        %v284 = vld [vmem:[%s265] sm:$0xff]
        %v285 = vld [vmem:[%s265 + $0x8] sm:$0xff]
        %v286 = vld [vmem:[%s275] sm:$0xff]
        %v287 = vld [vmem:[%s275 + $0x8] sm:$0xff]
        %vm288 = vcmask 64512
        %v289 = vsel %vm288, %v286, 0.0
        %290 = vadd.xlane.f32.xlu0 %v289
        %v291 = vpop.xlane.xlu0 %290
        %v292 = vsel %vm288, %v287, 0.0
        %293 = vadd.xlane.f32.xlu0 %v292
        %v294 = vpop.xlane.xlu0 %293
        %v295 = vmax.f32 %v291, 1.0
        %v296 = vmax.f32 %v294, 1.0
        %v297 = vlaneseq
        %v298 = vand.u32 %v297, 127
        %299 = vset.pattern.permute.xlu0 0
        %300 = vperm.xlu0 %299, %v284
        %v301 = vpop.permute.xlu0 %300
        %302 = vset.pattern.permute.xlu0 0
        %303 = vperm.xlu0 %302, %v285
        %v304 = vpop.permute.xlu0 %303
        %vm305 = vcmp.eq.s32.totalorder %v301, %v298
        %vm306 = vcmp.eq.s32.totalorder %v304, %v298
        %v307 = vsel %vm305, 1, 0
        %v308 = vsel %vm306, 1, 0
        %v309 = vcvt.s32.f32 %v307
        %v310 = vcvt.s32.f32 %v308
        %312 = vset.pattern.permute.xlu0 0
        %313 = vperm.xlu0 %312, %v286
        %v314 = vpop.permute.xlu0 %313
        %317 = vset.pattern.permute.xlu0 0
        %318 = vperm.xlu0 %317, %v287
        %v319 = vpop.permute.xlu0 %318
        %v321 = vmul.f32 %v314, %v309
        %v322 = vmul.f32 %v319, %v310
        %v323 = vadd.f32 %v321, 0.0
        %v324 = vadd.f32 %v322, 0.0
        %325 = vset.pattern.permute.xlu0 1
        %326 = vperm.xlu0 %325, %v284
        %v327 = vpop.permute.xlu0 %326
        %328 = vset.pattern.permute.xlu0 1
        %329 = vperm.xlu0 %328, %v285
        %v330 = vpop.permute.xlu0 %329
        %vm331 = vcmp.eq.s32.totalorder %v327, %v298
        %vm332 = vcmp.eq.s32.totalorder %v330, %v298
        %v333 = vsel %vm331, 1, 0
        %v334 = vsel %vm332, 1, 0
        %v335 = vcvt.s32.f32 %v333
        %v336 = vcvt.s32.f32 %v334
        %337 = vset.pattern.permute.xlu0 1
        %338 = vperm.xlu0 %337, %v286
        %v339 = vpop.permute.xlu0 %338
        %341 = vset.pattern.permute.xlu0 1
        %342 = vperm.xlu0 %341, %v287
        %v343 = vpop.permute.xlu0 %342
        %v345 = vmul.f32 %v339, %v335
        %v346 = vmul.f32 %v343, %v336
        %v347 = vadd.f32 %v323, %v345
        %v348 = vadd.f32 %v324, %v346
        %349 = vset.pattern.permute.xlu0 2
        %350 = vperm.xlu0 %349, %v284
        %v351 = vpop.permute.xlu0 %350
        %352 = vset.pattern.permute.xlu0 2
        %353 = vperm.xlu0 %352, %v285
        %v354 = vpop.permute.xlu0 %353
        %vm355 = vcmp.eq.s32.totalorder %v351, %v298
        %vm356 = vcmp.eq.s32.totalorder %v354, %v298
        %v357 = vsel %vm355, 1, 0
        %v358 = vsel %vm356, 1, 0
        %v359 = vcvt.s32.f32 %v357
        %v360 = vcvt.s32.f32 %v358
        %361 = vset.pattern.permute.xlu0 2
        %362 = vperm.xlu0 %361, %v286
        %v363 = vpop.permute.xlu0 %362
        %365 = vset.pattern.permute.xlu0 2
        %366 = vperm.xlu0 %365, %v287
        %v367 = vpop.permute.xlu0 %366
        %v369 = vmul.f32 %v363, %v359
        %v370 = vmul.f32 %v367, %v360
        %v371 = vadd.f32 %v347, %v369
        %v372 = vadd.f32 %v348, %v370
        %373 = vset.pattern.permute.xlu0 3
        %374 = vperm.xlu0 %373, %v284
        %v375 = vpop.permute.xlu0 %374
        %376 = vset.pattern.permute.xlu0 3
        %377 = vperm.xlu0 %376, %v285
        %v378 = vpop.permute.xlu0 %377
        %vm379 = vcmp.eq.s32.totalorder %v375, %v298
        %vm380 = vcmp.eq.s32.totalorder %v378, %v298
        %v381 = vsel %vm379, 1, 0
        %v382 = vsel %vm380, 1, 0
        %v383 = vcvt.s32.f32 %v381
        %v384 = vcvt.s32.f32 %v382
        %385 = vset.pattern.permute.xlu0 3
        %386 = vperm.xlu0 %385, %v286
        %v387 = vpop.permute.xlu0 %386
        %389 = vset.pattern.permute.xlu0 3
        %390 = vperm.xlu0 %389, %v287
        %v391 = vpop.permute.xlu0 %390
        %v393 = vmul.f32 %v387, %v383
        %v394 = vmul.f32 %v391, %v384
        %v395 = vadd.f32 %v371, %v393
        %v396 = vadd.f32 %v372, %v394
        %397 = vset.pattern.permute.xlu0 4
        %398 = vperm.xlu0 %397, %v284
        %v399 = vpop.permute.xlu0 %398
        %400 = vset.pattern.permute.xlu0 4
        %401 = vperm.xlu0 %400, %v285
        %v402 = vpop.permute.xlu0 %401
        %vm403 = vcmp.eq.s32.totalorder %v399, %v298
        %vm404 = vcmp.eq.s32.totalorder %v402, %v298
        %v405 = vsel %vm403, 1, 0
        %v406 = vsel %vm404, 1, 0
        %v407 = vcvt.s32.f32 %v405
        %v408 = vcvt.s32.f32 %v406
        %409 = vset.pattern.permute.xlu0 4
        %410 = vperm.xlu0 %409, %v286
        %v411 = vpop.permute.xlu0 %410
        %413 = vset.pattern.permute.xlu0 4
        %414 = vperm.xlu0 %413, %v287
        %v415 = vpop.permute.xlu0 %414
        %v417 = vmul.f32 %v411, %v407
        %v418 = vmul.f32 %v415, %v408
        %v419 = vadd.f32 %v395, %v417
        %v420 = vadd.f32 %v396, %v418
        %421 = vset.pattern.permute.xlu0 5
        %422 = vperm.xlu0 %421, %v284
        %v423 = vpop.permute.xlu0 %422
        %424 = vset.pattern.permute.xlu0 5
        %425 = vperm.xlu0 %424, %v285
        %v426 = vpop.permute.xlu0 %425
        %vm427 = vcmp.eq.s32.totalorder %v423, %v298
        %vm428 = vcmp.eq.s32.totalorder %v426, %v298
        %v429 = vsel %vm427, 1, 0
        %v430 = vsel %vm428, 1, 0
        %v431 = vcvt.s32.f32 %v429
        %v432 = vcvt.s32.f32 %v430
        %433 = vset.pattern.permute.xlu0 5
        %434 = vperm.xlu0 %433, %v286
        %v435 = vpop.permute.xlu0 %434
        %437 = vset.pattern.permute.xlu0 5
        %438 = vperm.xlu0 %437, %v287
        %v439 = vpop.permute.xlu0 %438
        %v441 = vmul.f32 %v435, %v431
        %v442 = vmul.f32 %v439, %v432
        %v443 = vadd.f32 %v419, %v441
        %v444 = vadd.f32 %v420, %v442
        %445 = vset.pattern.permute.xlu0 6
        %446 = vperm.xlu0 %445, %v284
        %v447 = vpop.permute.xlu0 %446
        %448 = vset.pattern.permute.xlu0 6
        %449 = vperm.xlu0 %448, %v285
        %v450 = vpop.permute.xlu0 %449
        %vm451 = vcmp.eq.s32.totalorder %v447, %v298
        %vm452 = vcmp.eq.s32.totalorder %v450, %v298
        %v453 = vsel %vm451, 1, 0
        %v454 = vsel %vm452, 1, 0
        %v455 = vcvt.s32.f32 %v453
        %v456 = vcvt.s32.f32 %v454
        %457 = vset.pattern.permute.xlu0 6
        %458 = vperm.xlu0 %457, %v286
        %v459 = vpop.permute.xlu0 %458
        %461 = vset.pattern.permute.xlu0 6
        %462 = vperm.xlu0 %461, %v287
        %v463 = vpop.permute.xlu0 %462
        %v465 = vmul.f32 %v459, %v455
        %v466 = vmul.f32 %v463, %v456
        %v467 = vadd.f32 %v443, %v465
        %v468 = vadd.f32 %v444, %v466
        %469 = vset.pattern.permute.xlu0 7
        %470 = vperm.xlu0 %469, %v284
        %v471 = vpop.permute.xlu0 %470
        %472 = vset.pattern.permute.xlu0 7
        %473 = vperm.xlu0 %472, %v285
        %v474 = vpop.permute.xlu0 %473
        %vm475 = vcmp.eq.s32.totalorder %v471, %v298
        %vm476 = vcmp.eq.s32.totalorder %v474, %v298
        %v477 = vsel %vm475, 1, 0
        %v478 = vsel %vm476, 1, 0
        %v479 = vcvt.s32.f32 %v477
        %v480 = vcvt.s32.f32 %v478
        %481 = vset.pattern.permute.xlu0 7
        %482 = vperm.xlu0 %481, %v286
        %v483 = vpop.permute.xlu0 %482
        %485 = vset.pattern.permute.xlu0 7
        %486 = vperm.xlu0 %485, %v287
        %v487 = vpop.permute.xlu0 %486
        %v489 = vmul.f32 %v483, %v479
        %v490 = vmul.f32 %v487, %v480
        %v491 = vadd.f32 %v467, %v489
        %v492 = vadd.f32 %v468, %v490
        %v493 = vpack.c.bf16 %v492, %v491
        %v494 = vld [vmem:[%s2] sm:$0xf]
        %v495 = vld [vmem:[%s2 + $0x4] sm:$0xf]
        %v496 = vld [vmem:[%s2 + $0x8] sm:$0xf]
        %v497 = vld [vmem:[%s2 + $0xc] sm:$0xf]
        %v498 = vld [vmem:[%s2 + $0x10] sm:$0xf]
        %v499 = vld [vmem:[%s2 + $0x14] sm:$0xf]
        %v500 = vld [vmem:[%s2 + $0x18] sm:$0xf]
        %v501 = vld [vmem:[%s2 + $0x1c] sm:$0xf]
        %v510 = vunpack.c.l.b16 %v494
        %v511 = vunpack.c.l.b16 %v495
        %v512 = vunpack.c.l.b16 %v496
        %v513 = vunpack.c.l.b16 %v497
        %v514 = vunpack.c.l.b16 %v498
        %v515 = vunpack.c.l.b16 %v499
        %v516 = vunpack.c.l.b16 %v500
        %v517 = vunpack.c.l.b16 %v501
        %v518 = vpack.c.b16 %v511, %v510
        %v519 = vpack.c.b16 %v513, %v512
        %v520 = vpack.c.b16 %v515, %v514
        %v521 = vpack.c.b16 %v517, %v516
        %vm526 = vcmask 523264
        %v528 = vsel %vm526, %v493, 0
        %530 = vmatprep.subr.bf16.mxu0 0
        %531 = vmatpush1.bf16.msra.mxu0 0
        %532 = vmatprep.subr.bf16.mxu0 0
        %533 = vmatpush1.bf16.msra.mxu0 0
        %534 = vmatprep.subr.bf16.mxu0 0
        %535 = vmatpush1.bf16.msra.mxu0 0
        %536 = vmatprep.subr.bf16.mxu0 0
        %537 = vmatpush1.bf16.msra.mxu0 0
        %538 = vmatprep.subr.bf16.mxu0 0
        %539 = vmatpush1.bf16.msra.mxu0 %v521
        %540 = vmatprep.subr.bf16.mxu0 0
        %541 = vmatpush1.bf16.msra.mxu0 %v520
        %542 = vmatprep.subr.bf16.mxu0 0
        %543 = vmatpush1.bf16.msra.mxu0 %v519
        %544 = vmatprep.subr.bf16.mxu0 0
        %545 = vmatpush1.bf16.msra.mxu0 %v518
        %546 = vmatprep.subr.bf16.mxu0 0
        %547 = vmatpush2.bf16.msra.mxu0 0
        %548 = vmatprep.subr.bf16.mxu0 0
        %549 = vmatpush2.bf16.msra.mxu0 0
        %550 = vmatprep.subr.bf16.mxu0 0
        %551 = vmatpush2.bf16.msra.mxu0 0
        %552 = vmatprep.subr.bf16.mxu0 0
        %553 = vmatpush2.bf16.msra.mxu0 0
        %554 = vmatprep.subr.bf16.mxu0 0
        %555 = vmatpush2.bf16.msra.mxu0 0
        %556 = vmatprep.subr.bf16.mxu0 0
        %557 = vmatpush2.bf16.msra.mxu0 0
        %558 = vmatprep.subr.bf16.mxu0 0
        %559 = vmatpush2.bf16.msra.mxu0 0
        %560 = vmatprep.subr.bf16.mxu0 0
        %561 = vmatpush2.bf16.msra.mxu0 0
        %562 = vmatprep.mubr.bf16.mxu0 0
        %563 = vmatmul.mubr.bf16.gmra.mxu0 %v528
        %v564 = vpop.f32.mrf.mxu0
        %v565 = vadd.f32 0.0, %v564
        %v566 = vpop.f32.mrf.mxu0
        %v567 = vpop.f32.mrf.mxu0
        %v568 = vadd.f32 0.0, %v567
        %v569 = vpop.f32.mrf.mxu0
        %570 = vdwg.mxu0
        %v571 = vrcp.pop %v295
        %v572 = vrcp.pop %v296
        %v573 = vmul.f32 %v565, %v571
        %v574 = vmul.f32 %v568, %v572
        %v575 = vpack.c.bf16 %v574, %v573
        %v576 = vld [vmem:[%s281] sm:$0xf]
        %v577 = vld [vmem:[%s281 + $0x4] sm:$0xf]
        %v578 = vld [vmem:[%s281 + $0x8] sm:$0xf]
        %v579 = vld [vmem:[%s281 + $0xc] sm:$0xf]
        %v584 = vunpack.c.l.b16 %v576
        %v585 = vunpack.c.l.b16 %v577
        %v586 = vunpack.c.l.b16 %v578
        %v587 = vunpack.c.l.b16 %v579
        %v588 = vpack.c.b16 %v585, %v584
        %v589 = vpack.c.b16 %v587, %v586
        %vm592 = vcmask 261120
        %v594 = vsel %vm592, %v575, 0
        %596 = vmatprep.subr.bf16.mxu0 0
        %597 = vmatpush1.bf16.msra.mxu0 0
        %598 = vmatprep.subr.bf16.mxu0 0
        %599 = vmatpush1.bf16.msra.mxu0 0
        %600 = vmatprep.subr.bf16.mxu0 0
        %601 = vmatpush1.bf16.msra.mxu0 0
        %602 = vmatprep.subr.bf16.mxu0 0
        %603 = vmatpush1.bf16.msra.mxu0 0
        %604 = vmatprep.subr.bf16.mxu0 0
        %605 = vmatpush1.bf16.msra.mxu0 0
        %606 = vmatprep.subr.bf16.mxu0 0
        %607 = vmatpush1.bf16.msra.mxu0 0
        %608 = vmatprep.subr.bf16.mxu0 0
        %609 = vmatpush1.bf16.msra.mxu0 %v589
        %610 = vmatprep.subr.bf16.mxu0 0
        %611 = vmatpush1.bf16.msra.mxu0 %v588
        %612 = vmatprep.subr.bf16.mxu0 0
        %613 = vmatpush2.bf16.msra.mxu0 0
        %614 = vmatprep.subr.bf16.mxu0 0
        %615 = vmatpush2.bf16.msra.mxu0 0
        %616 = vmatprep.subr.bf16.mxu0 0
        %617 = vmatpush2.bf16.msra.mxu0 0
        %618 = vmatprep.subr.bf16.mxu0 0
        %619 = vmatpush2.bf16.msra.mxu0 0
        %620 = vmatprep.subr.bf16.mxu0 0
        %621 = vmatpush2.bf16.msra.mxu0 0
        %622 = vmatprep.subr.bf16.mxu0 0
        %623 = vmatpush2.bf16.msra.mxu0 0
        %624 = vmatprep.subr.bf16.mxu0 0
        %625 = vmatpush2.bf16.msra.mxu0 0
        %626 = vmatprep.subr.bf16.mxu0 0
        %627 = vmatpush2.bf16.msra.mxu0 0
        %628 = vmatprep.mubr.bf16.mxu0 0
        %629 = vmatmul.mubr.bf16.gmra.mxu0 %v594
        %v630 = vpop.f32.mrf.mxu0
        %v631 = vadd.f32 0.0, %v630
        %v632 = vpop.f32.mrf.mxu0
        %v633 = vpop.f32.mrf.mxu0
        %v634 = vadd.f32 0.0, %v633
        %v635 = vpop.f32.mrf.mxu0
        %636 = vdwg.mxu0
        %637 = vst.msk [vmem:[%s256] sm:$0xff] %vm592, %v631
        %638 = vst.msk [vmem:[%s256 + $0x8] sm:$0xff] %vm592, %v634
        %s639 = sand.u32 %s143, 1
        %s640 = scalar_lea.sflag [#allocation3], %s639
        %s641 = sand.u32 %s143, 1
        %s642 = smul.addr %s641, 16
        %s643 = scalar_lea.vmem [#allocation2], %s642
        // Predicated region
        $region37: #{tpu_custom_call.1} parent=35 // pred_check
          %p644 = pneg %p153
        $region38: #{tpu_custom_call.1} parent=35 // pred_check_branch
          %646 = sbr.rel (%p644) target = $region40
        $region39: #{tpu_custom_call.1} parent=35 // pred_region
          %s647 = smul.u32 2, %s23
          %s649 = ssub.s32 256, 256
          %650 = vsyncadd %s640, %s649
          %s651 = smul.addr %s22, 2
          %s652 = sadd.s32 %s647, %s651
          %s653 = smul.addr %s652, 128
          %s654 = scalar_lea.hbm %s4, %s653
          %s655 = sshll.u32 %s643, 4
          %s656 = int_to_ptr.vmem [resolvable:$true] %s655
          %661 = dma.vmem_to_hbm [thread:$0]  %s656, 256, %s654, %s640, 128, 128, 8
        $region40: #{tpu_custom_call.1} parent=35 // pred_fallthru
          _
      $region36: #{tpu_custom_call.1} parent=5 // pred_fallthru
        _
      %p662 = scmp.le.s32.totalorder 2, %s13
      // Predicated region
      $region41: #{tpu_custom_call.1} parent=5 // pred_check
        %p663 = pneg %p662
      $region42: #{tpu_custom_call.1} parent=5 // pred_check_branch
        %665 = sbr.rel (%p663) target = $region44
      $region43: #{tpu_custom_call.1} parent=5 // pred_region
        %s666 = ssub.s32 %s13, 2
        // Predicated region
        $region45: #{tpu_custom_call.1} parent=43 // pred_check
          %p667 = pneg %p159
        $region46: #{tpu_custom_call.1} parent=43 // pred_check_branch
          %669 = sbr.rel (%p667) target = $region48
        $region47: #{tpu_custom_call.1} parent=43 // pred_region
          %s670 = sand.u32 %s144, 1
          %s671 = scalar_lea.sflag [#allocation3], %s670
          %s672 = sand.u32 %s144, 1
          %s673 = smul.addr %s672, 16
          %s674 = scalar_lea.vmem [#allocation2], %s673
          %675 = dma.done %s671, 256
        $region48: #{tpu_custom_call.1} parent=43 // pred_fallthru
          _
      $region44: #{tpu_custom_call.1} parent=5 // pred_fallthru
        _
    $region6: #{tpu_custom_call.1} parent=1 // loop_footer
      %s17 = sadd.s32 1, %s13
    $region7: #{tpu_custom_call.1} parent=1 // loop_footer_branch
      %12 = sbr.rel target = $region3
    $region8: #{tpu_custom_call.1} parent=1 // loop_exit
      _
    %676 = vsyncpa [#allocation3], 1
    %s677 = scalar_lea.sflag [#allocation3], 1
    %678 = vsyncpa %s677, 1

</llo_original>
